<compile_context>
chip_gen: v6e
topology: v6e:2x2x1
jax: 0.10.0
libtpu: 0.0.40
codegen_flags: <defaults>
</compile_context>

<pallas_src>
import functools

import jax
import jax.numpy as jnp
from jax import lax
from jax.experimental import pallas as pl
from jax.experimental.pallas import tpu as pltpu

HIDDEN = 64


def _mlp_kernel(x_ref, w1T_ref, b1_ref, w2_ref, b2_ref, o_ref, *, tanh_bf16):
    # x_ref  : (TB, F) f32   -- streamed batch tile, native layout
    # w1T_ref: (H, F)  bf16  -- VMEM-resident across grid steps
    # b1_ref : (H, 1)  f32
    # w2_ref : (H, 1)  f32
    # b2_ref : (1, 1)  f32 in SMEM (scalar)
    # o_ref  : (1, TB) f32   -- lane-dense output (batch on lanes)
    x_bf = x_ref[...].astype(jnp.bfloat16)                       # in-kernel cast
    # h = W1 @ x^T by contracting the matching F axes -> (H, TB), batch on lanes.
    h = lax.dot_general(
        w1T_ref[...], x_bf,
        dimension_numbers=(((1,), (1,)), ((), ())),
        preferred_element_type=jnp.float32)                      # MXU, f32 acc
    h = h + b1_ref[...]
    if tanh_bf16:
        # v6e/v7x: EUP bf16 path ~2x throughput; within bf16 tolerance.
        h = jnp.tanh(h.astype(jnp.bfloat16)).astype(jnp.float32)
    else:
        # v5e: no bf16 VPU/EUP -> keep f32.
        h = jnp.tanh(h)
    # Second linear layer (H -> 1): VPU multiply + XLU sublane reduce.
    o = jnp.sum(h * w2_ref[...], axis=0, keepdims=True)          # (1, TB)
    o_ref[...] = (o + b2_ref[0, 0]).astype(o_ref.dtype)


def _is_v5() -> bool:
    try:
        kind = jax.devices()[0].device_kind.lower()
    except Exception:
        return False
    return "v5" in kind


def mushroom_mlp_forward(x, w1, b1, w2, b2, *, max_tile_b: int = 16384):
    """x: (B, F) f32; w1: (F, 64); b1: (64,); w2: (64, 1); b2: (1,). Returns (B, 1)."""
    B, F = x.shape
    H = w1.shape[1]

    # Batch tile: as large as the VMEM budget allows, multiple of 128 when tiled.
    if B <= max_tile_b:
        TB = B
    else:
        TB = max((max_tile_b // 128) * 128, 128)
    grid = (pl.cdiv(B, TB),)

    # Weight / bias layout plumbing (tiny one-time casts in the wrapper).
    x_f32 = x.astype(jnp.float32)
    w1T = w1.T.astype(jnp.bfloat16)                   # (H, F)
    b1c = b1.reshape(H, 1).astype(jnp.float32)        # (H, 1)
    w2c = w2.reshape(H, 1).astype(jnp.float32)        # (H, 1)
    b2s = b2.reshape(1, 1).astype(jnp.float32)        # SMEM scalar

    # VMEM budget (lane/sublane-padded, double-buffered x + output tiles,
    # small resident weights, headroom); capped at 48 MiB for v7x's 64 MiB/TC.
    lane = 128
    x_tile_bytes = TB * max(F, lane) * 4              # f32 tile, lanes padded to 128
    out_tile_bytes = 8 * TB * 4                       # (1, TB) padded to 8 sublanes
    weights_bytes = 2 * (H * max(F, lane) * 2 + 2 * H * lane * 4)
    vmem_bytes = 2 * (x_tile_bytes + out_tile_bytes) + weights_bytes + (4 << 20)
    vmem_limit = int(min(max(vmem_bytes, 16 << 20), 48 << 20))

    flops = 2 * B * F * H + 3 * B * H
    bytes_accessed = (x_f32.size * 4 + w1T.size * 2 + b1c.size * 4 +
                      w2c.size * 4 + b2s.size * 4 + B * 4)

    kernel = functools.partial(_mlp_kernel, tanh_bf16=not _is_v5())

    out_t = pl.pallas_call(
        kernel,
        out_shape=jax.ShapeDtypeStruct((1, B), jnp.float32),
        grid_spec=pl.GridSpec(
            grid=grid,
            in_specs=[
                pl.BlockSpec((TB, F), lambda i: (i, 0)),   # streamed x tile (native)
                pl.BlockSpec((H, F), lambda i: (0, 0)),    # resident weights
                pl.BlockSpec((H, 1), lambda i: (0, 0)),
                pl.BlockSpec((H, 1), lambda i: (0, 0)),
                pl.BlockSpec(memory_space=pltpu.MemorySpace.SMEM),
            ],
            out_specs=pl.BlockSpec((1, TB), lambda i: (0, i)),
        ),
        compiler_params=pltpu.CompilerParams(
            dimension_semantics=("parallel",),
            vmem_limit_bytes=vmem_limit,
        ),
        cost_estimate=pl.CostEstimate(
            flops=flops,
            transcendentals=B * H,
            bytes_accessed=bytes_accessed,
        ),
    )(x_f32, w1T, b1c, w2c, b2s)

    return out_t.T                                    # (B, 1)


def init_params(key, num_features: int, hidden: int = HIDDEN):
    """Deterministic init mimicking PyTorch nn.Linear default (uniform +/- 1/sqrt(fan_in))."""
    k1, k2, k3, k4 = jax.random.split(key, 4)
    bound1 = 1.0 / (num_features ** 0.5)
    bound2 = 1.0 / (hidden ** 0.5)
    w1 = jax.random.uniform(k1, (num_features, hidden), jnp.float32,
                            minval=-bound1, maxval=bound1)
    b1 = jax.random.uniform(k2, (hidden,), jnp.float32,
                            minval=-bound1, maxval=bound1)
    w2 = jax.random.uniform(k3, (hidden, 1), jnp.float32,
                            minval=-bound2, maxval=bound2)
    b2 = jax.random.uniform(k4, (1,), jnp.float32,
                            minval=-bound2, maxval=bound2)
    return w1, b1, w2, b2


def _reference(x, w1, b1, w2, b2):
    return jnp.tanh(x @ w1 + b1) @ w2 + b2


if __name__ == "__main__":
    key = jax.random.PRNGKey(0)
    kx, kp, kx2 = jax.random.split(key, 3)

    # Small shapes consistent with the module (batch=8, num_features=32).
    B, F = 8, 32
    x = jax.random.normal(kx, (B, F), jnp.float32)
    w1, b1, w2, b2 = init_params(kp, F)

    out = jax.block_until_ready(mushroom_mlp_forward(x, w1, b1, w2, b2))
    ref = _reference(x, w1, b1, w2, b2)
    assert out.shape == (B, 1)
    # bf16 MXU operands (and bf16 tanh on v6e/v7x) -> modest tolerance vs f32 ref.
    assert jnp.allclose(out, ref, atol=2e-2, rtol=2e-2), "small-batch mismatch"

    # Exercise the tiled / pipelined path (grid > 1) with a smaller tile cap so
    # the test stays cheap while still covering multi-step pipelining.
    B2 = 4096
    x2 = jax.random.normal(kx2, (B2, F), jnp.float32)
    out2 = jax.block_until_ready(
        mushroom_mlp_forward(x2, w1, b1, w2, b2, max_tile_b=1024))
    ref2 = _reference(x2, w1, b1, w2, b2)
    assert out2.shape == (B2, 1)
    assert jnp.allclose(out2, ref2, atol=2e-2, rtol=2e-2), "tiled-batch mismatch"

    print("KERNEL_OK")
</pallas_src>

<mosaic_0001>
module attributes {stable_mosaic.version = 11 : i64} {
  func.func @_mlp_kernel(%arg0: i32, %arg1: memref<8x32xf32, #tpu.memory_space<vmem>>, %arg2: memref<64x32xbf16, #tpu.memory_space<vmem>>, %arg3: memref<64x1xf32, #tpu.memory_space<vmem>>, %arg4: memref<64x1xf32, #tpu.memory_space<vmem>>, %arg5: memref<1x1xf32, #tpu.memory_space<smem>>, %arg6: memref<1x8xf32, #tpu.memory_space<vmem>>) attributes {dimension_semantics = [#tpu.dimension_semantics<parallel>], iteration_bounds = array<i64: 1>, scalar_prefetch = 0 : i64, scratch_operands = 0 : i64, tpu.core_type = #tpu.core_type<tc>, window_params = [{transform_indices = @transform_0, window_bounds = array<i64: 8, 32>}, {pipeline_mode = #tpu.pipeline_mode<synchronous>, transform_indices = @transform_1, window_bounds = array<i64: 64, 32>}, {pipeline_mode = #tpu.pipeline_mode<synchronous>, transform_indices = @transform_2, window_bounds = array<i64: 64, 1>}, {pipeline_mode = #tpu.pipeline_mode<synchronous>, transform_indices = @transform_3, window_bounds = array<i64: 64, 1>}, {transform_indices = @transform_4, window_bounds = array<i64: 1, 1>}, {transform_indices = @transform_5, window_bounds = array<i64: 1, 8>}]} {
    %c0 = arith.constant 0 : index
    %c0_0 = arith.constant 0 : index
    %0 = vector.load %arg1[%c0, %c0_0] : memref<8x32xf32, #tpu.memory_space<vmem>>, vector<8x32xf32>
    %1 = arith.truncf %0 : vector<8x32xf32> to vector<8x32xbf16>
    %c0_1 = arith.constant 0 : index
    %c0_2 = arith.constant 0 : index
    %2 = vector.load %arg2[%c0_1, %c0_2] : memref<64x32xbf16, #tpu.memory_space<vmem>>, vector<64x32xbf16>
    %cst = arith.constant dense<0.000000e+00> : vector<64x8xf32>
    %3 = tpu.matmul %2, %1, %cst {dimension_numbers = #tpu.dot_dimension_numbers<[1], [1], [0], [0], [0, 0, 1, 0], [], []>} : vector<64x32xbf16>, vector<8x32xbf16>, vector<64x8xf32> -> vector<64x8xf32>
    %c0_3 = arith.constant 0 : index
    %c0_4 = arith.constant 0 : index
    %4 = vector.load %arg3[%c0_3, %c0_4] : memref<64x1xf32, #tpu.memory_space<vmem>>, vector<64x1xf32>
    %5 = vector.broadcast %4 : vector<64x1xf32> to vector<64x8xf32>
    %6 = arith.addf %3, %5 : vector<64x8xf32>
    %7 = arith.truncf %6 : vector<64x8xf32> to vector<64x8xbf16>
    %8 = math.tanh %7 : vector<64x8xbf16>
    %9 = arith.extf %8 : vector<64x8xbf16> to vector<64x8xf32>
    %c0_5 = arith.constant 0 : index
    %c0_6 = arith.constant 0 : index
    %10 = vector.load %arg4[%c0_5, %c0_6] : memref<64x1xf32, #tpu.memory_space<vmem>>, vector<64x1xf32>
    %11 = vector.broadcast %10 : vector<64x1xf32> to vector<64x8xf32>
    %12 = arith.mulf %9, %11 : vector<64x8xf32>
    %cst_7 = arith.constant dense<0.000000e+00> : vector<8xf32>
    %13 = vector.multi_reduction <add>, %12, %cst_7 [0] : vector<64x8xf32> to vector<8xf32>
    %14 = vector.shape_cast %13 : vector<8xf32> to vector<1x8xf32>
    %c0_8 = arith.constant 0 : index
    %c0_9 = arith.constant 0 : index
    %15 = memref.load %arg5[%c0_8, %c0_9] : memref<1x1xf32, #tpu.memory_space<smem>>
    %16 = vector.broadcast %15 : f32 to vector<1x8xf32>
    %17 = arith.addf %14, %16 : vector<1x8xf32>
    %c0_10 = arith.constant 0 : index
    %c0_11 = arith.constant 0 : index
    %18 = vector.load %arg6[%c0_10, %c0_11] : memref<1x8xf32, #tpu.memory_space<vmem>>, vector<1x8xf32>
    tpu.vector_store %arg6[%c0_10, %c0_11], %17 {strides = array<i32>} : memref<1x8xf32, #tpu.memory_space<vmem>>, vector<1x8xf32>,
    return
  }
  func.func @transform_0(%arg0: i32) -> (i32, i32) {
    %c0_i32 = arith.constant 0 : i32
    %c0_i32_0 = arith.constant 0 : i32
    return %arg0, %c0_i32 : i32, i32
  }
  func.func @transform_1(%arg0: i32) -> (i32, i32) {
    %c0_i32 = arith.constant 0 : i32
    %c0_i32_0 = arith.constant 0 : i32
    %c0_i32_1 = arith.constant 0 : i32
    return %c0_i32, %c0_i32_0 : i32, i32
  }
  func.func @transform_2(%arg0: i32) -> (i32, i32) {
    %c0_i32 = arith.constant 0 : i32
    %c0_i32_0 = arith.constant 0 : i32
    %c0_i32_1 = arith.constant 0 : i32
    return %c0_i32, %c0_i32_0 : i32, i32
  }
  func.func @transform_3(%arg0: i32) -> (i32, i32) {
    %c0_i32 = arith.constant 0 : i32
    %c0_i32_0 = arith.constant 0 : i32
    %c0_i32_1 = arith.constant 0 : i32
    return %c0_i32, %c0_i32_0 : i32, i32
  }
  func.func @transform_4(%arg0: i32) -> (i32, i32) {
    %c0_i32 = arith.constant 0 : i32
    %c0_i32_0 = arith.constant 0 : i32
    %c0_i32_1 = arith.constant 0 : i32
    return %c0_i32, %c0_i32_0 : i32, i32
  }
  func.func @transform_5(%arg0: i32) -> (i32, i32) {
    %c0_i32 = arith.constant 0 : i32
    %c0_i32_0 = arith.constant 0 : i32
    return %c0_i32, %arg0 : i32, i32
  }
}

</mosaic_0001>

<llo_original>
// kernel: tpu_custom_call.1
$region0: #{tpu_custom_call.1}
  #allocation0 [shape = 'u32[]', space=smem, size = 0x4, offset = 0x4, fixed_abs, tag = 'smem constant byte address 0x4 - core index']
  #allocation1 [shape = 'u32[144,128]{1,0:T(1,128)}', space=vmem, size = 0x12000, scoped, tag = 'internal scratch']
  #allocation2 [shape = 'f32[1,1]{1,0:T(1,128)S(6)}', space=smem, size = 0x200, scoped, tag = 'scoped memory for tpu_custom_call.1']
  %s0 = inlined_call_operand.vmem [shape: f32[8,32], index: 0, kind: input, shape index: {}]
  %s1 = inlined_call_operand.vmem [shape: bf16[64,32], index: 1, kind: input, shape index: {}]
  %s2 = inlined_call_operand.vmem [shape: f32[64,1], index: 2, kind: input, shape index: {}]
  %s3 = inlined_call_operand.vmem [shape: f32[64,1], index: 3, kind: input, shape index: {}]
  %s4 = inlined_call_operand.<no memory space> [shape: f32[1,1], index: 4, kind: input, shape index: {}]
  %s5 = inlined_call_operand.hbm [shape: f32[1,8], index: 5, kind: output, shape index: {}]
  %s6 = sld [smem:[#allocation0]]
  $region30: #{tpu_custom_call.1} parent=0
    _
  %s8 = ssub.s32 1, %s6
  %s9 = scalar_select 0, %s8, %s6
  %10 = sst [smem:[#allocation2]] %s4
  $region1: #{tpu_custom_call.1} parent=0
    #allocation3 [shape = 'u8[512]{0}', space=vmem, size = 0x400, scoped, tag = 'output window, operand 0, single buffered']
    #allocation4 [shape = 's32[1]{0}', space=sflag, size = 0x4, scoped, tag = 'scoped memory for tpu_custom_call.1']
    %11 = vsyncpa [#allocation4], 0
    // Predicated region
    $region2: #{tpu_custom_call.1} parent=1 // pred_check
      _
    $region3: #{tpu_custom_call.1} parent=1 // pred_check_branch
      %13 = sbr.rel (0) target = $region5
    $region4: #{tpu_custom_call.1} parent=1 // pred_region
      _
    $region5: #{tpu_custom_call.1} parent=1 // pred_fallthru
      _
    // Predicated region
    $region6: #{tpu_custom_call.1} parent=1 // pred_check
      _
    $region7: #{tpu_custom_call.1} parent=1 // pred_check_branch
      %15 = sbr.rel (0) target = $region9
    $region8: #{tpu_custom_call.1} parent=1 // pred_region
      _
    $region9: #{tpu_custom_call.1} parent=1 // pred_fallthru
      _
    // Predicated region
    $region10: #{tpu_custom_call.1} parent=1 // pred_check
      _
    $region11: #{tpu_custom_call.1} parent=1 // pred_check_branch
      %17 = sbr.rel (0) target = $region13
    $region12: #{tpu_custom_call.1} parent=1 // pred_region
      _
    $region13: #{tpu_custom_call.1} parent=1 // pred_fallthru
      _
    // Predicated region
    $region14: #{tpu_custom_call.1} parent=1 // pred_check
      _
    $region15: #{tpu_custom_call.1} parent=1 // pred_check_branch
      %19 = sbr.rel (0) target = $region17
    $region16: #{tpu_custom_call.1} parent=1 // pred_region
      _
    $region17: #{tpu_custom_call.1} parent=1 // pred_fallthru
      _
    // Predicated region
    $region18: #{tpu_custom_call.1} parent=1 // pred_check
      _
    $region19: #{tpu_custom_call.1} parent=1 // pred_check_branch
      %21 = sbr.rel (0) target = $region21
    $region20: #{tpu_custom_call.1} parent=1 // pred_region
      _
    $region21: #{tpu_custom_call.1} parent=1 // pred_fallthru
      _
    %v23 = vld [vmem:[%s0] sm:$0xff]
    %v24 = vpack.c.bf16 %v23, %v23
    %v25 = vld [vmem:[%s1] sm:$0xf]
    %v26 = vld [vmem:[%s1 + $0x4] sm:$0xf]
    %v27 = vld [vmem:[%s1 + $0x8] sm:$0xf]
    %v28 = vld [vmem:[%s1 + $0xc] sm:$0xf]
    %v29 = vld [vmem:[%s1 + $0x10] sm:$0xf]
    %v30 = vld [vmem:[%s1 + $0x14] sm:$0xf]
    %v31 = vld [vmem:[%s1 + $0x18] sm:$0xf]
    %v32 = vld [vmem:[%s1 + $0x1c] sm:$0xf]
    %v33 = vld [vmem:[%s2] sm:$0xff]
    %v34 = vld [vmem:[%s2 + $0x8] sm:$0xff]
    %v35 = vld [vmem:[%s2 + $0x10] sm:$0xff]
    %v36 = vld [vmem:[%s2 + $0x18] sm:$0xff]
    %v37 = vld [vmem:[%s2 + $0x20] sm:$0xff]
    %v38 = vld [vmem:[%s2 + $0x28] sm:$0xff]
    %v39 = vld [vmem:[%s2 + $0x30] sm:$0xff]
    %v40 = vld [vmem:[%s2 + $0x38] sm:$0xff]
    %42 = vset.pattern.permute.xlu0 0
    %43 = vperm.xlu0 %42, %v33
    %v44 = vpop.permute.xlu0 %43
    %47 = vset.pattern.permute.xlu0 0
    %48 = vperm.xlu0 %47, %v34
    %v49 = vpop.permute.xlu0 %48
    %52 = vset.pattern.permute.xlu0 0
    %53 = vperm.xlu0 %52, %v35
    %v54 = vpop.permute.xlu0 %53
    %57 = vset.pattern.permute.xlu0 0
    %58 = vperm.xlu0 %57, %v36
    %v59 = vpop.permute.xlu0 %58
    %62 = vset.pattern.permute.xlu0 0
    %63 = vperm.xlu0 %62, %v37
    %v64 = vpop.permute.xlu0 %63
    %67 = vset.pattern.permute.xlu0 0
    %68 = vperm.xlu0 %67, %v38
    %v69 = vpop.permute.xlu0 %68
    %72 = vset.pattern.permute.xlu0 0
    %73 = vperm.xlu0 %72, %v39
    %v74 = vpop.permute.xlu0 %73
    %77 = vset.pattern.permute.xlu0 0
    %78 = vperm.xlu0 %77, %v40
    %v79 = vpop.permute.xlu0 %78
    %v89 = vunpack.c.l.b16 %v25
    %v90 = vunpack.c.l.b16 %v26
    %v91 = vunpack.c.l.b16 %v27
    %v92 = vunpack.c.l.b16 %v28
    %v93 = vunpack.c.l.b16 %v29
    %v94 = vunpack.c.l.b16 %v30
    %v95 = vunpack.c.l.b16 %v31
    %v96 = vunpack.c.l.b16 %v32
    %v97 = vpack.c.b16 %v90, %v89
    %v98 = vpack.c.b16 %v92, %v91
    %v99 = vpack.c.b16 %v94, %v93
    %v100 = vpack.c.b16 %v96, %v95
    %vm101 = vcmask 261120
    %v103 = vsel %vm101, %v97, 0
    %v106 = vsel %vm101, %v98, 0
    %v109 = vsel %vm101, %v99, 0
    %v112 = vsel %vm101, %v100, 0
    %v115 = vsel %vm101, %v24, 0
    %117 = vmatprep.subr.bf16.mxu0 0
    %118 = vmatpush1.bf16.xpose.msra.mxu0 0
    %119 = vmatprep.subr.bf16.mxu0 0
    %120 = vmatpush1.bf16.xpose.msra.mxu0 0
    %121 = vmatprep.subr.bf16.mxu0 0
    %122 = vmatpush1.bf16.xpose.msra.mxu0 0
    %123 = vmatprep.subr.bf16.mxu0 0
    %124 = vmatpush1.bf16.xpose.msra.mxu0 0
    %125 = vmatprep.subr.bf16.mxu0 0
    %126 = vmatpush1.bf16.xpose.msra.mxu0 0
    %127 = vmatprep.subr.bf16.mxu0 0
    %128 = vmatpush1.bf16.xpose.msra.mxu0 0
    %129 = vmatprep.subr.bf16.mxu0 0
    %130 = vmatpush1.bf16.xpose.msra.mxu0 0
    %131 = vmatprep.subr.bf16.mxu0 0
    %132 = vmatpush1.bf16.xpose.msra.mxu0 %v115
    %133 = vmatprep.subr.bf16.mxu0 0
    %134 = vmatpush2.bf16.xpose.msra.mxu0 0
    %135 = vmatprep.subr.bf16.mxu0 0
    %136 = vmatpush2.bf16.xpose.msra.mxu0 0
    %137 = vmatprep.subr.bf16.mxu0 0
    %138 = vmatpush2.bf16.xpose.msra.mxu0 0
    %139 = vmatprep.subr.bf16.mxu0 0
    %140 = vmatpush2.bf16.xpose.msra.mxu0 0
    %141 = vmatprep.subr.bf16.mxu0 0
    %142 = vmatpush2.bf16.xpose.msra.mxu0 0
    %143 = vmatprep.subr.bf16.mxu0 0
    %144 = vmatpush2.bf16.xpose.msra.mxu0 0
    %145 = vmatprep.subr.bf16.mxu0 0
    %146 = vmatpush2.bf16.xpose.msra.mxu0 0
    %147 = vmatprep.subr.bf16.mxu0 0
    %148 = vmatpush2.bf16.xpose.msra.mxu0 0
    %149 = vmatprep.mubr.bf16.mxu0 0
    %150 = vmatmul.mubr.bf16.gmra.mxu0 %v103
    %v151 = vpop.f32.mrf.mxu0
    %v152 = vadd.f32 %v44, %v151
    %v153 = vpop.f32.mrf.mxu0
    %v154 = vpop.f32.mrf.mxu0
    %v155 = vadd.f32 %v49, %v154
    %v156 = vpop.f32.mrf.mxu0
    %157 = vmatprep.mubr.bf16.mxu0 0
    %158 = vmatmul.mubr.bf16.gmra.mxu0 %v106
    %v159 = vpop.f32.mrf.mxu0
    %v160 = vadd.f32 %v54, %v159
    %v161 = vpop.f32.mrf.mxu0
    %v162 = vpop.f32.mrf.mxu0
    %v163 = vadd.f32 %v59, %v162
    %v164 = vpop.f32.mrf.mxu0
    %165 = vmatprep.mubr.bf16.mxu0 0
    %166 = vmatmul.mubr.bf16.gmra.mxu0 %v109
    %v167 = vpop.f32.mrf.mxu0
    %v168 = vadd.f32 %v64, %v167
    %v169 = vpop.f32.mrf.mxu0
    %v170 = vpop.f32.mrf.mxu0
    %v171 = vadd.f32 %v69, %v170
    %v172 = vpop.f32.mrf.mxu0
    %173 = vmatprep.mubr.bf16.mxu0 0
    %174 = vmatmul.mubr.bf16.gmra.mxu0 %v112
    %v175 = vpop.f32.mrf.mxu0
    %v176 = vadd.f32 %v74, %v175
    %v177 = vpop.f32.mrf.mxu0
    %v178 = vpop.f32.mrf.mxu0
    %v179 = vadd.f32 %v79, %v178
    %v180 = vpop.f32.mrf.mxu0
    %181 = vdwg.mxu0
    %v182 = vpack.c.bf16 %v155, %v152
    %v183 = vpack.c.bf16 %v163, %v160
    %v184 = vpack.c.bf16 %v171, %v168
    %v185 = vpack.c.bf16 %v179, %v176
    %v186 = vtanh.bf16.pop %v182
    %v187 = vtanh.bf16.pop %v183
    %v188 = vtanh.bf16.pop %v184
    %v189 = vtanh.bf16.pop %v185
    %v190 = vunpack.c.l.bf16 %v186
    %v191 = vunpack.c.h.bf16 %v186
    %v192 = vunpack.c.l.bf16 %v187
    %v193 = vunpack.c.h.bf16 %v187
    %v194 = vunpack.c.l.bf16 %v188
    %v195 = vunpack.c.h.bf16 %v188
    %v196 = vunpack.c.l.bf16 %v189
    %v197 = vunpack.c.h.bf16 %v189
    %v198 = vld [vmem:[%s3] sm:$0xff]
    %v199 = vld [vmem:[%s3 + $0x8] sm:$0xff]
    %v200 = vld [vmem:[%s3 + $0x10] sm:$0xff]
    %v201 = vld [vmem:[%s3 + $0x18] sm:$0xff]
    %v202 = vld [vmem:[%s3 + $0x20] sm:$0xff]
    %v203 = vld [vmem:[%s3 + $0x28] sm:$0xff]
    %v204 = vld [vmem:[%s3 + $0x30] sm:$0xff]
    %v205 = vld [vmem:[%s3 + $0x38] sm:$0xff]
    %207 = vset.pattern.permute.xlu0 0
    %208 = vperm.xlu0 %207, %v198
    %v209 = vpop.permute.xlu0 %208
    %212 = vset.pattern.permute.xlu0 0
    %213 = vperm.xlu0 %212, %v199
    %v214 = vpop.permute.xlu0 %213
    %217 = vset.pattern.permute.xlu0 0
    %218 = vperm.xlu0 %217, %v200
    %v219 = vpop.permute.xlu0 %218
    %222 = vset.pattern.permute.xlu0 0
    %223 = vperm.xlu0 %222, %v201
    %v224 = vpop.permute.xlu0 %223
    %227 = vset.pattern.permute.xlu0 0
    %228 = vperm.xlu0 %227, %v202
    %v229 = vpop.permute.xlu0 %228
    %232 = vset.pattern.permute.xlu0 0
    %233 = vperm.xlu0 %232, %v203
    %v234 = vpop.permute.xlu0 %233
    %237 = vset.pattern.permute.xlu0 0
    %238 = vperm.xlu0 %237, %v204
    %v239 = vpop.permute.xlu0 %238
    %242 = vset.pattern.permute.xlu0 0
    %243 = vperm.xlu0 %242, %v205
    %v244 = vpop.permute.xlu0 %243
    %v246 = vmul.f32 %v190, %v209
    %v247 = vmul.f32 %v191, %v214
    %v248 = vmul.f32 %v192, %v219
    %v249 = vmul.f32 %v193, %v224
    %v250 = vmul.f32 %v194, %v229
    %v251 = vmul.f32 %v195, %v234
    %v252 = vmul.f32 %v196, %v239
    %v253 = vmul.f32 %v197, %v244
    %vm254 = vcmask 64512
    %v255 = vsel %vm254, %v246, 0.0
    %v256 = vsel %vm254, %v247, 0.0
    %v257 = vadd.f32 %v255, %v256
    %v258 = vsel %vm254, %v248, 0.0
    %v259 = vadd.f32 %v257, %v258
    %v260 = vsel %vm254, %v249, 0.0
    %v261 = vadd.f32 %v259, %v260
    %v262 = vsel %vm254, %v250, 0.0
    %v263 = vadd.f32 %v261, %v262
    %v264 = vsel %vm254, %v251, 0.0
    %v265 = vadd.f32 %v263, %v264
    %v266 = vsel %vm254, %v252, 0.0
    %v267 = vadd.f32 %v265, %v266
    %v268 = vsel %vm254, %v253, 0.0
    %v269 = vadd.f32 %v267, %v268
    %v270 = vrot.slane %v269, 4
    %v271 = vadd.f32 %v269, %v270
    %v272 = vrot.slane %v271, 2
    %v273 = vadd.f32 %v271, %v272
    %v274 = vrot.slane %v273, 1
    %v275 = vadd.f32 %v273, %v274
    %s276 = sld [smem:[#allocation2]]
    %v277 = vstv %s276
    %v278 = vadd.f32 %v275, %v277
    %vm279 = vcmask 57344
    %280 = vst.msk [vmem:[#allocation3] sm:$0x1] %vm279, %v278
    // Predicated region
    $region22: #{tpu_custom_call.1} parent=1 // pred_check
      _
    $region23: #{tpu_custom_call.1} parent=1 // pred_check_branch
      %282 = sbr.rel (0) target = $region25
    $region24: #{tpu_custom_call.1} parent=1 // pred_region
      %s284 = ssub.s32 16, 16
      %285 = vsyncadd [#allocation4], %s284
      %s287 = sshll.u32 [#allocation3], 4
      %s288 = int_to_ptr.vmem [resolvable:$true] %s287
      %290 = dma.vmem_to_hbm [thread:$0]  %s288, 16, %s5, [#allocation4]
    $region25: #{tpu_custom_call.1} parent=1 // pred_fallthru
      _
    // Predicated region
    $region26: #{tpu_custom_call.1} parent=1 // pred_check
      _
    $region27: #{tpu_custom_call.1} parent=1 // pred_check_branch
      %292 = sbr.rel (0) target = $region29
    $region28: #{tpu_custom_call.1} parent=1 // pred_region
      %293 = dma.done [#allocation4], 16
    $region29: #{tpu_custom_call.1} parent=1 // pred_fallthru
      _
    %294 = vsyncpa [#allocation4], 1

</llo_original>
